<compile_context>
chip_gen: v6e
topology: v6e:2x2x1
jax: 0.10.0
libtpu: 0.0.40
codegen_flags: <defaults>
</compile_context>

<pallas_src>
import jax
import jax.numpy as jnp
import numpy as np
from jax.experimental import pallas as pl
from jax.experimental.pallas import tpu as pltpu


def _feature_interaction_kernel(x_ref, out_ref):
    # x_ref:   (TB, F)        input feature block
    # out_ref: (TB, out_dim)  upper-triangular pairwise products
    x = x_ref[...]                       # (TB, F)
    f = x.shape[1]
    off = 0
    # F is static -> statically unrolled; row i of the triangle is
    # x[:, i] * x[:, i:], stored contiguously (matches torch row-major
    # boolean-mask flattening order, diagonal included).
    for i in range(f):
        seg = f - i
        out_ref[:, off:off + seg] = (x[:, i:i + 1] * x[:, i:]).astype(out_ref.dtype)
        off += seg


def _pick_block_b(B, F, out_dim, itemsize,
                  vmem_budget_bytes=12 * 1024 * 1024, max_tb=1024):
    """Largest batch tile (multiple of 8, capped) whose double-buffered
    x-block + out-block fit in the VMEM budget."""
    per_row = 2 * (F + out_dim) * itemsize          # 2x: double buffering
    tb = vmem_budget_bytes // max(per_row, 1)
    tb = max(8, min(max_tb, (tb // 8) * 8))
    if B <= tb:
        return B                                    # single full-batch block
    return tb


def feature_interaction(x, *, block_b=None):
    """x: (B, F) float array -> (B, F*(F+1)//2) pairwise interactions."""
    B, F = x.shape
    out_dim = F * (F + 1) // 2
    itemsize = jnp.dtype(x.dtype).itemsize

    if block_b is None:
        tb = _pick_block_b(B, F, out_dim, itemsize)
    else:
        tb = min(block_b, B) if B <= block_b else block_b

    grid = (pl.cdiv(B, tb),)

    cost = pl.CostEstimate(
        flops=B * out_dim,                           # one multiply per output
        transcendentals=0,
        bytes_accessed=(B * F + B * out_dim) * itemsize,
    )

    return pl.pallas_call(
        _feature_interaction_kernel,
        out_shape=jax.ShapeDtypeStruct((B, out_dim), x.dtype),
        grid=grid,
        in_specs=[pl.BlockSpec((tb, F), lambda i: (i, 0))],
        out_specs=pl.BlockSpec((tb, out_dim), lambda i: (i, 0)),
        compiler_params=pltpu.CompilerParams(
            dimension_semantics=("parallel",),       # v7x: shard batch over 2 TCs
            vmem_limit_bytes=32 * 1024 * 1024,       # safe on v5e/v6e/v7x
        ),
        cost_estimate=cost,
    )(x)


def _reference(x):
    """Pure-JAX reference reproducing the torch semantics."""
    outer = x[:, :, None] * x[:, None, :]
    rows, cols = np.triu_indices(x.shape[1])         # includes diagonal
    return outer[:, rows, cols]


if __name__ == "__main__":
    key = jax.random.PRNGKey(0)

    # Small shape consistent with the module: batch=4, feature_dim=8 -> out_dim=36.
    B, F = 4, 8
    x = jax.random.normal(key, (B, F), dtype=jnp.float32)
    out = jax.block_until_ready(feature_interaction(x))
    ref = _reference(x)
    assert out.shape == (B, F * (F + 1) // 2), out.shape
    np.testing.assert_allclose(np.asarray(out), np.asarray(ref),
                               rtol=1e-5, atol=1e-5)

    # Multi-block grid with a ragged last batch tile (B=40, TB=16 -> 3 blocks).
    key2 = jax.random.PRNGKey(0)
    B2, F2 = 40, 8
    x2 = jax.random.normal(key2, (B2, F2), dtype=jnp.float32)
    out2 = jax.block_until_ready(feature_interaction(x2, block_b=16))
    np.testing.assert_allclose(np.asarray(out2), np.asarray(_reference(x2)),
                               rtol=1e-5, atol=1e-5)

    print("KERNEL_OK")
</pallas_src>

<mosaic_0001>
module attributes {stable_mosaic.version = 11 : i64} {
  func.func @_feature_interaction_kernel(%arg0: i32, %arg1: memref<4x8xf32, #tpu.memory_space<vmem>>, %arg2: memref<4x36xf32, #tpu.memory_space<vmem>>) attributes {dimension_semantics = [#tpu.dimension_semantics<parallel>], iteration_bounds = array<i64: 1>, scalar_prefetch = 0 : i64, scratch_operands = 0 : i64, tpu.core_type = #tpu.core_type<tc>, window_params = [{transform_indices = @transform_0, window_bounds = array<i64: 4, 8>}, {transform_indices = @transform_1, window_bounds = array<i64: 4, 36>}]} {
    %c0 = arith.constant 0 : index
    %c0_0 = arith.constant 0 : index
    %0 = vector.load %arg1[%c0, %c0_0] : memref<4x8xf32, #tpu.memory_space<vmem>>, vector<4x8xf32>
    %1 = vector.extract_strided_slice %0 {offsets = [0, 0], sizes = [4, 1], strides = [1, 1]} : vector<4x8xf32> to vector<4x1xf32>
    %2 = vector.broadcast %1 : vector<4x1xf32> to vector<4x8xf32>
    %3 = arith.mulf %2, %0 : vector<4x8xf32>
    %c0_1 = arith.constant 0 : index
    %c0_2 = arith.constant 0 : index
    %4 = vector.load %arg2[%c0_1, %c0_2] : memref<4x36xf32, #tpu.memory_space<vmem>>, vector<4x8xf32>
    tpu.vector_store %arg2[%c0_1, %c0_2], %3 {strides = array<i32>} : memref<4x36xf32, #tpu.memory_space<vmem>>, vector<4x8xf32>,
    %5 = vector.extract_strided_slice %0 {offsets = [0, 1], sizes = [4, 1], strides = [1, 1]} : vector<4x8xf32> to vector<4x1xf32>
    %6 = vector.extract_strided_slice %0 {offsets = [0, 1], sizes = [4, 7], strides = [1, 1]} : vector<4x8xf32> to vector<4x7xf32>
    %7 = vector.broadcast %5 : vector<4x1xf32> to vector<4x7xf32>
    %8 = arith.mulf %7, %6 : vector<4x7xf32>
    %c0_3 = arith.constant 0 : index
    %c8 = arith.constant 8 : index
    %9 = vector.load %arg2[%c0_3, %c8] : memref<4x36xf32, #tpu.memory_space<vmem>>, vector<4x7xf32>
    tpu.vector_store %arg2[%c0_3, %c8], %8 {strides = array<i32>} : memref<4x36xf32, #tpu.memory_space<vmem>>, vector<4x7xf32>,
    %10 = vector.extract_strided_slice %0 {offsets = [0, 2], sizes = [4, 1], strides = [1, 1]} : vector<4x8xf32> to vector<4x1xf32>
    %11 = vector.extract_strided_slice %0 {offsets = [0, 2], sizes = [4, 6], strides = [1, 1]} : vector<4x8xf32> to vector<4x6xf32>
    %12 = vector.broadcast %10 : vector<4x1xf32> to vector<4x6xf32>
    %13 = arith.mulf %12, %11 : vector<4x6xf32>
    %c0_4 = arith.constant 0 : index
    %c15 = arith.constant 15 : index
    %14 = vector.load %arg2[%c0_4, %c15] : memref<4x36xf32, #tpu.memory_space<vmem>>, vector<4x6xf32>
    tpu.vector_store %arg2[%c0_4, %c15], %13 {strides = array<i32>} : memref<4x36xf32, #tpu.memory_space<vmem>>, vector<4x6xf32>,
    %15 = vector.extract_strided_slice %0 {offsets = [0, 3], sizes = [4, 1], strides = [1, 1]} : vector<4x8xf32> to vector<4x1xf32>
    %16 = vector.extract_strided_slice %0 {offsets = [0, 3], sizes = [4, 5], strides = [1, 1]} : vector<4x8xf32> to vector<4x5xf32>
    %17 = vector.broadcast %15 : vector<4x1xf32> to vector<4x5xf32>
    %18 = arith.mulf %17, %16 : vector<4x5xf32>
    %c0_5 = arith.constant 0 : index
    %c21 = arith.constant 21 : index
    %19 = vector.load %arg2[%c0_5, %c21] : memref<4x36xf32, #tpu.memory_space<vmem>>, vector<4x5xf32>
    tpu.vector_store %arg2[%c0_5, %c21], %18 {strides = array<i32>} : memref<4x36xf32, #tpu.memory_space<vmem>>, vector<4x5xf32>,
    %20 = vector.extract_strided_slice %0 {offsets = [0, 4], sizes = [4, 1], strides = [1, 1]} : vector<4x8xf32> to vector<4x1xf32>
    %21 = vector.extract_strided_slice %0 {offsets = [0, 4], sizes = [4, 4], strides = [1, 1]} : vector<4x8xf32> to vector<4x4xf32>
    %22 = vector.broadcast %20 : vector<4x1xf32> to vector<4x4xf32>
    %23 = arith.mulf %22, %21 : vector<4x4xf32>
    %c0_6 = arith.constant 0 : index
    %c26 = arith.constant 26 : index
    %24 = vector.load %arg2[%c0_6, %c26] : memref<4x36xf32, #tpu.memory_space<vmem>>, vector<4x4xf32>
    tpu.vector_store %arg2[%c0_6, %c26], %23 {strides = array<i32>} : memref<4x36xf32, #tpu.memory_space<vmem>>, vector<4x4xf32>,
    %25 = vector.extract_strided_slice %0 {offsets = [0, 5], sizes = [4, 1], strides = [1, 1]} : vector<4x8xf32> to vector<4x1xf32>
    %26 = vector.extract_strided_slice %0 {offsets = [0, 5], sizes = [4, 3], strides = [1, 1]} : vector<4x8xf32> to vector<4x3xf32>
    %27 = vector.broadcast %25 : vector<4x1xf32> to vector<4x3xf32>
    %28 = arith.mulf %27, %26 : vector<4x3xf32>
    %c0_7 = arith.constant 0 : index
    %c30 = arith.constant 30 : index
    %29 = vector.load %arg2[%c0_7, %c30] : memref<4x36xf32, #tpu.memory_space<vmem>>, vector<4x3xf32>
    tpu.vector_store %arg2[%c0_7, %c30], %28 {strides = array<i32>} : memref<4x36xf32, #tpu.memory_space<vmem>>, vector<4x3xf32>,
    %30 = vector.extract_strided_slice %0 {offsets = [0, 6], sizes = [4, 1], strides = [1, 1]} : vector<4x8xf32> to vector<4x1xf32>
    %31 = vector.extract_strided_slice %0 {offsets = [0, 6], sizes = [4, 2], strides = [1, 1]} : vector<4x8xf32> to vector<4x2xf32>
    %32 = vector.broadcast %30 : vector<4x1xf32> to vector<4x2xf32>
    %33 = arith.mulf %32, %31 : vector<4x2xf32>
    %c0_8 = arith.constant 0 : index
    %c33 = arith.constant 33 : index
    %34 = vector.load %arg2[%c0_8, %c33] : memref<4x36xf32, #tpu.memory_space<vmem>>, vector<4x2xf32>
    tpu.vector_store %arg2[%c0_8, %c33], %33 {strides = array<i32>} : memref<4x36xf32, #tpu.memory_space<vmem>>, vector<4x2xf32>,
    %35 = vector.extract_strided_slice %0 {offsets = [0, 7], sizes = [4, 1], strides = [1, 1]} : vector<4x8xf32> to vector<4x1xf32>
    %36 = vector.extract_strided_slice %0 {offsets = [0, 7], sizes = [4, 1], strides = [1, 1]} : vector<4x8xf32> to vector<4x1xf32>
    %37 = arith.mulf %35, %36 : vector<4x1xf32>
    %c0_9 = arith.constant 0 : index
    %c35 = arith.constant 35 : index
    %38 = vector.load %arg2[%c0_9, %c35] : memref<4x36xf32, #tpu.memory_space<vmem>>, vector<4x1xf32>
    tpu.vector_store %arg2[%c0_9, %c35], %37 {strides = array<i32>} : memref<4x36xf32, #tpu.memory_space<vmem>>, vector<4x1xf32>,
    return
  }
  func.func @transform_0(%arg0: i32) -> (i32, i32) {
    %c0_i32 = arith.constant 0 : i32
    %c0_i32_0 = arith.constant 0 : i32
    return %arg0, %c0_i32 : i32, i32
  }
  func.func @transform_1(%arg0: i32) -> (i32, i32) {
    %c0_i32 = arith.constant 0 : i32
    %c0_i32_0 = arith.constant 0 : i32
    return %arg0, %c0_i32 : i32, i32
  }
}

</mosaic_0001>

<llo_original>
// kernel: tpu_custom_call.1
$region0: #{tpu_custom_call.1}
  #allocation0 [shape = 'u32[]', space=smem, size = 0x4, offset = 0x4, fixed_abs, tag = 'smem constant byte address 0x4 - core index']
  #allocation1 [shape = 'u32[144,128]{1,0:T(1,128)}', space=vmem, size = 0x12000, scoped, tag = 'internal scratch']
  %s0 = inlined_call_operand.hbm [shape: f32[4,8], index: 0, kind: input, shape index: {}]
  %s1 = inlined_call_operand.hbm [shape: f32[4,36], index: 1, kind: output, shape index: {}]
  %s2 = sld [smem:[#allocation0]]
  $region18: #{tpu_custom_call.1} parent=0
    _
  %s4 = ssub.s32 1, %s2
  %s5 = scalar_select 0, %s4, %s2
  $region1: #{tpu_custom_call.1} parent=0
    #allocation2 [shape = 'u8[2048]{0}', space=vmem, size = 0x800, scoped, tag = 'input window, operand 0, single buffered']
    #allocation3 [shape = 's32[1]{0}', space=sflag, size = 0x4, scoped, tag = 'scoped memory for tpu_custom_call.1']
    #allocation4 [shape = 's32[1]{0}', space=sflag, size = 0x4, scoped, tag = 'scoped memory for tpu_custom_call.1']
    #allocation5 [shape = 'u8[2048]{0}', space=vmem, size = 0x800, scoped, tag = 'output window, operand 0, single buffered']
    %6 = vsyncpa [#allocation3], 0
    %7 = vsyncpa [#allocation4], 0
    // Predicated region
    $region2: #{tpu_custom_call.1} parent=1 // pred_check
      _
    $region3: #{tpu_custom_call.1} parent=1 // pred_check_branch
      %9 = sbr.rel (0) target = $region5
    $region4: #{tpu_custom_call.1} parent=1 // pred_region
      %s11 = ssub.s32 64, 64
      %12 = vsyncadd [#allocation3], %s11
      %s14 = sshll.u32 [#allocation2], 4
      %s15 = int_to_ptr.vmem [resolvable:$true] %s14
      %17 = dma.hbm_to_vmem [thread:$0]  %s0, 64, %s15, [#allocation3]
    $region5: #{tpu_custom_call.1} parent=1 // pred_fallthru
      _
    // Predicated region
    $region6: #{tpu_custom_call.1} parent=1 // pred_check
      _
    $region7: #{tpu_custom_call.1} parent=1 // pred_check_branch
      %19 = sbr.rel (0) target = $region9
    $region8: #{tpu_custom_call.1} parent=1 // pred_region
      %20 = dma.done [#allocation3], 64
    $region9: #{tpu_custom_call.1} parent=1 // pred_fallthru
      _
    %v21 = vld [vmem:[#allocation2] sm:$0xf]
    %23 = vset.pattern.permute.xlu0 0
    %24 = vperm.xlu0 %23, %v21
    %v25 = vpop.permute.xlu0 %24
    %v27 = vmul.f32 %v25, %v21
    %vm28 = vcmask 60416
    %29 = vst.msk [vmem:[#allocation5] sm:$0xf] %vm28, %v27
    %30 = vset.pattern.permute.xlu0 1
    %31 = vperm.xlu0 %30, %v21
    %v32 = vpop.permute.xlu0 %31
    %v34 = vmul.f32 %v32, %v21
    %36 = vrot.lane.b32.xlu0 %v34, 7
    %v37 = vpop.permute.xlu0 %36
    %vm39 = vcmask 117824
    %40 = vst.msk [vmem:[#allocation5] sm:$0xf] %vm39, %v37
    %41 = vset.pattern.permute.xlu0 2
    %42 = vperm.xlu0 %41, %v21
    %v43 = vpop.permute.xlu0 %42
    %v45 = vmul.f32 %v43, %v21
    %47 = vrot.lane.b32.xlu0 %v45, 13
    %v48 = vpop.permute.xlu0 %47
    %vm50 = vcmask 167032
    %51 = vst.msk [vmem:[#allocation5] sm:$0xf] %vm50, %v48
    %52 = vset.pattern.permute.xlu0 3
    %53 = vperm.xlu0 %52, %v21
    %v54 = vpop.permute.xlu0 %53
    %v56 = vmul.f32 %v54, %v21
    %58 = vrot.lane.b32.xlu0 %v56, 18
    %v59 = vpop.permute.xlu0 %58
    %vm61 = vcmask 208040
    %62 = vst.msk [vmem:[#allocation5] sm:$0xf] %vm61, %v59
    %63 = vset.pattern.permute.xlu0 4
    %64 = vperm.xlu0 %63, %v21
    %v65 = vpop.permute.xlu0 %64
    %v67 = vmul.f32 %v65, %v21
    %69 = vrot.lane.b32.xlu0 %v67, 22
    %v70 = vpop.permute.xlu0 %69
    %vm72 = vcmask 240848
    %73 = vst.msk [vmem:[#allocation5] sm:$0xf] %vm72, %v70
    %74 = vset.pattern.permute.xlu0 5
    %75 = vperm.xlu0 %74, %v21
    %v76 = vpop.permute.xlu0 %75
    %v78 = vmul.f32 %v76, %v21
    %80 = vrot.lane.b32.xlu0 %v78, 25
    %v81 = vpop.permute.xlu0 %80
    %vm83 = vcmask 265456
    %84 = vst.msk [vmem:[#allocation5] sm:$0xf] %vm83, %v81
    %85 = vset.pattern.permute.xlu0 6
    %86 = vperm.xlu0 %85, %v21
    %v87 = vpop.permute.xlu0 %86
    %v89 = vmul.f32 %v87, %v21
    %91 = vrot.lane.b32.xlu0 %v89, 27
    %v92 = vpop.permute.xlu0 %91
    %vm94 = vcmask 281864
    %95 = vst.msk [vmem:[#allocation5] sm:$0xf] %vm94, %v92
    %v96 = vmul.f32 %v21, %v21
    %98 = vrot.lane.b32.xlu0 %v96, 28
    %v99 = vpop.permute.xlu0 %98
    %vm101 = vcmask 290072
    %102 = vst.msk [vmem:[#allocation5] sm:$0xf] %vm101, %v99
    // Predicated region
    $region10: #{tpu_custom_call.1} parent=1 // pred_check
      _
    $region11: #{tpu_custom_call.1} parent=1 // pred_check_branch
      %104 = sbr.rel (0) target = $region13
    $region12: #{tpu_custom_call.1} parent=1 // pred_region
      %s106 = ssub.s32 64, 64
      %107 = vsyncadd [#allocation4], %s106
      %s109 = sshll.u32 [#allocation5], 4
      %s110 = int_to_ptr.vmem [resolvable:$true] %s109
      %112 = dma.vmem_to_hbm [thread:$0]  %s110, 64, %s1, [#allocation4]
    $region13: #{tpu_custom_call.1} parent=1 // pred_fallthru
      _
    // Predicated region
    $region14: #{tpu_custom_call.1} parent=1 // pred_check
      _
    $region15: #{tpu_custom_call.1} parent=1 // pred_check_branch
      %114 = sbr.rel (0) target = $region17
    $region16: #{tpu_custom_call.1} parent=1 // pred_region
      %115 = dma.done [#allocation4], 64
    $region17: #{tpu_custom_call.1} parent=1 // pred_fallthru
      _
    %116 = vsyncpa [#allocation3], 1
    %117 = vsyncpa [#allocation4], 1

</llo_original>
